<compile_context>
chip_gen: v5e
topology: v5e:2x2
jax: 0.10.0
libtpu: 0.0.40
codegen_flags: <defaults>
</compile_context>

<pallas_src>
import functools

import jax
import jax.numpy as jnp
from jax import lax
from jax.experimental import pallas as pl
from jax.experimental.pallas import tpu as pltpu


# ----------------------------------------------------------------------------
# Single-invocation fused kernel (no grid): whole (tiny) batch per call.
#   x_ref   : (B*T, C)        query-side activations (bf16)
#   mem_ref : (B*S, C)        key/value-side activations (bf16)
#   wq_ref  : (C, H*HP)       all heads' Q weights, 1/sqrt(Hd) folded in,
#                             head h in lanes [h*HP, h*HP+Hd), rest zero
#   wkv_ref : (C, 2*H*HP)     [all K heads | all V heads], same lane layout
#   wp_ref  : (H*HP, Cp)      output projection, padded rows/lanes zero
#   bp_ref  : (1, Cp)         output projection bias (f32, lane-padded)
#   o_ref   : (B*T, Cp)       final output (f32, lane-dense)
# ----------------------------------------------------------------------------
def fused_mha_kernel(x_ref, mem_ref, wq_ref, wkv_ref, wp_ref, bp_ref, o_ref,
                     *, batch, t_len, s_len, n_head, head_pad, masked):
    B, T, S, H, HP = batch, t_len, s_len, n_head, head_pad
    D = H * HP

    # Fused all-head QKV projections over the flattened (B*T / B*S) rows:
    # bf16 MXU operands, f32 accumulation.  Kept as values (no scratch).
    q = jnp.dot(x_ref[...], wq_ref[...],
                preferred_element_type=jnp.float32).astype(jnp.bfloat16)       # (B*T, D)
    kv = jnp.dot(mem_ref[...], wkv_ref[...],
                 preferred_element_type=jnp.float32).astype(jnp.bfloat16)      # (B*S, 2D)

    if masked:
        row = lax.broadcasted_iota(jnp.int32, (T, S), 0)
        col = lax.broadcasted_iota(jnp.int32, (T, S), 1)
        # Finite large-negative (not -inf) avoids NaNs if a row were ever fully
        # masked.  Built once, reused by every (batch, head).
        bias = jnp.where(col <= row, jnp.float32(0.0), jnp.float32(-1e30))

    head_outs = []
    for h in range(H):                       # static unroll; H is small
        per_b = []
        for b in range(B):
            # All slices are at 128-lane / 8-sublane boundaries -> unmasked.
            qh = q[b * T:(b + 1) * T, h * HP:(h + 1) * HP]            # (T, HP)
            kh = kv[b * S:(b + 1) * S, h * HP:(h + 1) * HP]           # (S, HP)
            vh = kv[b * S:(b + 1) * S, D + h * HP:D + (h + 1) * HP]   # (S, HP)

            # Contract last dims directly; padded lanes are zero in both q & k.
            s = lax.dot_general(qh, kh, (((1,), (1,)), ((), ())),
                                preferred_element_type=jnp.float32)   # (T, S)
            if masked:
                s = s + bias
            m = jnp.max(s, axis=-1, keepdims=True)
            e = jnp.exp(s - m)
            # EUP approximate reciprocal instead of a VPU divide.
            p = (e * pl.reciprocal(jnp.sum(e, axis=-1, keepdims=True),
                                   approx=True)).astype(jnp.bfloat16)
            per_b.append(jnp.dot(p, vh, preferred_element_type=jnp.float32))
        head_outs.append(
            jnp.concatenate(per_b, axis=0).astype(jnp.bfloat16))      # (B*T, HP)

    # Head outputs concatenated on lanes (vreg placement only, all 128-aligned)
    # followed by a single lane-dense output projection + bias.
    cat = jnp.concatenate(head_outs, axis=1)                          # (B*T, D)
    y = jnp.dot(cat, wp_ref[...], preferred_element_type=jnp.float32)
    o_ref[...] = y + bp_ref[...]


def _round_up(x, m):
    return ((x + m - 1) // m) * m


def _pad_heads_to_lanes(w, hp):
    """(H, C, Hd) per-head weights -> (C, H*hp); head h occupies lanes
    [h*hp, h*hp + Hd) of the output dim, remaining lanes are zero."""
    H, C, Hd = w.shape
    wpad = jnp.zeros((H, C, hp), w.dtype).at[:, :, :Hd].set(w)
    return jnp.transpose(wpad, (1, 0, 2)).reshape(C, H * hp)


def multi_head_attention(index, memory, wq, wk, wv, w_proj, b_proj, *, masked):
    """
    index : (B, T, C)
    memory: (B, S, C)
    wq/wk/wv: (H, C, Hd)      per-head Linear(n_embed, head_size) weights
    w_proj: (H*Hd, C_out)     b_proj: (C_out,)
    returns (B, T, C_out)  float32
    """
    B, T, C = index.shape
    _, S, _ = memory.shape
    H, _, Hd = wq.shape
    C_out = w_proj.shape[1]

    HP = _round_up(Hd, 128)       # lane-aligned per-head slot
    Cp = _round_up(C_out, 128)    # lane-dense output width
    D = H * HP
    scale = Hd ** -0.5

    # Heads concatenated on lanes (matching torch.cat([h(...)], dim=-1) order
    # once padded lanes are dropped), each zero-padded to a 128-lane slot.
    # 1/sqrt(Hd) is folded into Wq while it is being repacked anyway.
    wq_f = _pad_heads_to_lanes(wq * scale, HP)           # (C, D)
    wk_f = _pad_heads_to_lanes(wk, HP)                   # (C, D)
    wv_f = _pad_heads_to_lanes(wv, HP)                   # (C, D)
    wkv_f = jnp.concatenate([wk_f, wv_f], axis=-1)       # (C, 2D)

    # Output projection: pad each head's Hd rows to HP and C_out lanes to Cp;
    # the padded rows line up with the (zero) padded head-output lanes.
    wp_r = w_proj.reshape(H, Hd, C_out)
    wp_pad = jnp.zeros((H, HP, Cp), w_proj.dtype).at[:, :Hd, :C_out].set(wp_r)
    wp_f = wp_pad.reshape(D, Cp)
    bp_f = jnp.zeros((1, Cp), jnp.float32).at[0, :C_out].set(b_proj)

    # bf16 MXU operands; batch folded into the matmul M dimension.
    x2 = index.reshape(B * T, C).astype(jnp.bfloat16)
    m2 = memory.reshape(B * S, C).astype(jnp.bfloat16)
    wq_bf = wq_f.astype(jnp.bfloat16)
    wkv_bf = wkv_f.astype(jnp.bfloat16)
    wp_bf = wp_f.astype(jnp.bfloat16)

    # Explicit VMEM budget sized from the actual resident buffers (+ headroom),
    # clamped to stay within v7x's 64 MiB physical VMEM.
    operand_bytes = sum(a.size * a.dtype.itemsize
                        for a in (x2, m2, wq_bf, wkv_bf, wp_bf, bp_f))
    operand_bytes += B * T * Cp * 4                       # f32 output block
    vmem_limit = int(min(max(4 * operand_bytes, 8 << 20), 64 << 20))

    kernel = functools.partial(
        fused_mha_kernel, batch=B, t_len=T, s_len=S,
        n_head=H, head_pad=HP, masked=masked)

    vmem = pltpu.MemorySpace.VMEM
    out = pl.pallas_call(
        kernel,
        out_shape=jax.ShapeDtypeStruct((B * T, Cp), jnp.float32),
        in_specs=[pl.BlockSpec(memory_space=vmem)] * 6,
        out_specs=pl.BlockSpec(memory_space=vmem),
        compiler_params=pltpu.CompilerParams(vmem_limit_bytes=vmem_limit),
    )(x2, m2, wq_bf, wkv_bf, wp_bf, bp_f)

    # dropout: identity in eval mode; drop the lane padding outside the kernel.
    return out.reshape(B, T, Cp)[:, :, :C_out]


def _reference(index, memory, wq, wk, wv, w_proj, b_proj, *, masked):
    B, T, C = index.shape
    H, _, Hd = wq.shape
    q = jnp.einsum("btc,hcd->bhtd", index, wq)
    k = jnp.einsum("bsc,hcd->bhsd", memory, wk)
    v = jnp.einsum("bsc,hcd->bhsd", memory, wv)
    s = jnp.einsum("bhtd,bhsd->bhts", q, k) * (Hd ** -0.5)
    if masked:
        S = memory.shape[1]
        mask = jnp.tril(jnp.ones((T, S), dtype=bool))
        s = jnp.where(mask[None, None], s, -jnp.inf)
    p = jax.nn.softmax(s, axis=-1)
    o = jnp.einsum("bhts,bhsd->bhtd", p, v)
    cat = jnp.transpose(o, (0, 2, 1, 3)).reshape(B, T, H * Hd)
    return cat @ w_proj + b_proj


if __name__ == "__main__":
    # Module hyperparameters (small, consistent with the forward pass).
    n_head, n_embed, head_size, block_size, masked = 4, 32, 8, 8, True
    B, T, S = 2, block_size, block_size

    key = jax.random.PRNGKey(0)
    ks = jax.random.split(key, 7)
    wscale = 0.05
    index = jax.random.normal(ks[0], (B, T, n_embed), jnp.float32)
    memory = jax.random.normal(ks[1], (B, S, n_embed), jnp.float32)
    # Per-head Linear(n_embed, head_size, bias=False) weights, stored (in, out).
    wq = wscale * jax.random.normal(ks[2], (n_head, n_embed, head_size), jnp.float32)
    wk = wscale * jax.random.normal(ks[3], (n_head, n_embed, head_size), jnp.float32)
    wv = wscale * jax.random.normal(ks[4], (n_head, n_embed, head_size), jnp.float32)
    # proj = Linear(head_size * n_head, n_embed): weight (out,in) -> stored (in,out).
    w_proj = wscale * jax.random.normal(ks[5], (head_size * n_head, n_embed), jnp.float32)
    b_proj = wscale * jax.random.normal(ks[6], (n_embed,), jnp.float32)

    out = multi_head_attention(index, memory, wq, wk, wv, w_proj, b_proj,
                               masked=masked)
    out = jax.block_until_ready(out)

    ref = _reference(index, memory, wq, wk, wv, w_proj, b_proj, masked=masked)
    assert out.shape == (B, T, n_embed)
    # bf16 MXU operands (with f32 accumulation) vs an all-f32 reference:
    # compare at bf16-level tolerance.
    assert jnp.allclose(out, ref, atol=2e-2, rtol=2e-2), "mismatch vs reference"
    print("KERNEL_OK")
</pallas_src>

<mosaic_0001>
module attributes {stable_mosaic.version = 11 : i64} {
  func.func @fused_mha_kernel(%arg0: memref<16x32xbf16, #tpu.memory_space<vmem>>, %arg1: memref<16x32xbf16, #tpu.memory_space<vmem>>, %arg2: memref<32x512xbf16, #tpu.memory_space<vmem>>, %arg3: memref<32x1024xbf16, #tpu.memory_space<vmem>>, %arg4: memref<512x128xbf16, #tpu.memory_space<vmem>>, %arg5: memref<1x128xf32, #tpu.memory_space<vmem>>, %arg6: memref<16x128xf32, #tpu.memory_space<vmem>>) attributes {dimension_semantics = [], scalar_prefetch = 0 : i64, scratch_operands = 0 : i64, tpu.core_type = #tpu.core_type<tc>} {
    %c0 = arith.constant 0 : index
    %c0_0 = arith.constant 0 : index
    %0 = vector.load %arg0[%c0, %c0_0] : memref<16x32xbf16, #tpu.memory_space<vmem>>, vector<16x32xbf16>
    %c0_1 = arith.constant 0 : index
    %c0_2 = arith.constant 0 : index
    %1 = vector.load %arg2[%c0_1, %c0_2] : memref<32x512xbf16, #tpu.memory_space<vmem>>, vector<32x512xbf16>
    %cst = arith.constant dense<0.000000e+00> : vector<16x512xf32>
    %2 = tpu.matmul %0, %1, %cst {dimension_numbers = #tpu.dot_dimension_numbers<[1], [0], [0], [1], [0, 0, 1, 1], [], []>} : vector<16x32xbf16>, vector<32x512xbf16>, vector<16x512xf32> -> vector<16x512xf32>
    %3 = arith.truncf %2 : vector<16x512xf32> to vector<16x512xbf16>
    %c0_3 = arith.constant 0 : index
    %c0_4 = arith.constant 0 : index
    %4 = vector.load %arg1[%c0_3, %c0_4] : memref<16x32xbf16, #tpu.memory_space<vmem>>, vector<16x32xbf16>
    %c0_5 = arith.constant 0 : index
    %c0_6 = arith.constant 0 : index
    %5 = vector.load %arg3[%c0_5, %c0_6] : memref<32x1024xbf16, #tpu.memory_space<vmem>>, vector<32x1024xbf16>
    %cst_7 = arith.constant dense<0.000000e+00> : vector<16x1024xf32>
    %6 = tpu.matmul %4, %5, %cst_7 {dimension_numbers = #tpu.dot_dimension_numbers<[1], [0], [0], [1], [0, 0, 1, 1], [], []>} : vector<16x32xbf16>, vector<32x1024xbf16>, vector<16x1024xf32> -> vector<16x1024xf32>
    %7 = arith.truncf %6 : vector<16x1024xf32> to vector<16x1024xbf16>
    %8 = tpu.iota {dimensions = array<i32: 0>} : vector<8x8xi32>
    %9 = tpu.iota {dimensions = array<i32: 1>} : vector<8x8xi32>
    %10 = arith.cmpi sle, %9, %8 : vector<8x8xi32>
    %cst_8 = arith.constant 0.000000e+00 : f32
    %cst_9 = arith.constant -1.000000e+30 : f32
    %11 = vector.broadcast %cst_8 : f32 to vector<8x8xf32>
    %12 = vector.broadcast %cst_9 : f32 to vector<8x8xf32>
    %13 = arith.select %10, %11, %12 : vector<8x8xi1>, vector<8x8xf32>
    %14 = vector.extract_strided_slice %3 {offsets = [0, 0], sizes = [8, 128], strides = [1, 1]} : vector<16x512xbf16> to vector<8x128xbf16>
    %15 = vector.extract_strided_slice %7 {offsets = [0, 0], sizes = [8, 128], strides = [1, 1]} : vector<16x1024xbf16> to vector<8x128xbf16>
    %16 = vector.extract_strided_slice %7 {offsets = [0, 512], sizes = [8, 128], strides = [1, 1]} : vector<16x1024xbf16> to vector<8x128xbf16>
    %cst_10 = arith.constant dense<0.000000e+00> : vector<8x8xf32>
    %17 = tpu.matmul %14, %15, %cst_10 {dimension_numbers = #tpu.dot_dimension_numbers<[1], [1], [0], [0], [0, 0, 1, 0], [], []>} : vector<8x128xbf16>, vector<8x128xbf16>, vector<8x8xf32> -> vector<8x8xf32>
    %18 = arith.addf %17, %13 : vector<8x8xf32>
    %cst_11 = arith.constant dense<0xFF800000> : vector<8xf32>
    %19 = vector.multi_reduction <maximumf>, %18, %cst_11 [1] : vector<8x8xf32> to vector<8xf32>
    %20 = vector.shape_cast %19 : vector<8xf32> to vector<8x1xf32>
    %21 = vector.broadcast %20 : vector<8x1xf32> to vector<8x8xf32>
    %22 = arith.subf %18, %21 : vector<8x8xf32>
    %23 = math.exp %22 : vector<8x8xf32>
    %cst_12 = arith.constant dense<0.000000e+00> : vector<8xf32>
    %24 = vector.multi_reduction <add>, %23, %cst_12 [1] : vector<8x8xf32> to vector<8xf32>
    %25 = vector.shape_cast %24 : vector<8xf32> to vector<8x1xf32>
    %26 = tpu.reciprocal %25 {approx = true} : vector<8x1xf32> -> vector<8x1xf32>
    %27 = vector.broadcast %26 : vector<8x1xf32> to vector<8x8xf32>
    %28 = arith.mulf %23, %27 : vector<8x8xf32>
    %29 = arith.truncf %28 : vector<8x8xf32> to vector<8x8xbf16>
    %cst_13 = arith.constant dense<0.000000e+00> : vector<8x128xf32>
    %30 = tpu.matmul %29, %16, %cst_13 {dimension_numbers = #tpu.dot_dimension_numbers<[1], [0], [0], [1], [0, 0, 1, 1], [], []>} : vector<8x8xbf16>, vector<8x128xbf16>, vector<8x128xf32> -> vector<8x128xf32>
    %31 = vector.extract_strided_slice %3 {offsets = [8, 0], sizes = [8, 128], strides = [1, 1]} : vector<16x512xbf16> to vector<8x128xbf16>
    %32 = vector.extract_strided_slice %7 {offsets = [8, 0], sizes = [8, 128], strides = [1, 1]} : vector<16x1024xbf16> to vector<8x128xbf16>
    %33 = vector.extract_strided_slice %7 {offsets = [8, 512], sizes = [8, 128], strides = [1, 1]} : vector<16x1024xbf16> to vector<8x128xbf16>
    %cst_14 = arith.constant dense<0.000000e+00> : vector<8x8xf32>
    %34 = tpu.matmul %31, %32, %cst_14 {dimension_numbers = #tpu.dot_dimension_numbers<[1], [1], [0], [0], [0, 0, 1, 0], [], []>} : vector<8x128xbf16>, vector<8x128xbf16>, vector<8x8xf32> -> vector<8x8xf32>
    %35 = arith.addf %34, %13 : vector<8x8xf32>
    %cst_15 = arith.constant dense<0xFF800000> : vector<8xf32>
    %36 = vector.multi_reduction <maximumf>, %35, %cst_15 [1] : vector<8x8xf32> to vector<8xf32>
    %37 = vector.shape_cast %36 : vector<8xf32> to vector<8x1xf32>
    %38 = vector.broadcast %37 : vector<8x1xf32> to vector<8x8xf32>
    %39 = arith.subf %35, %38 : vector<8x8xf32>
    %40 = math.exp %39 : vector<8x8xf32>
    %cst_16 = arith.constant dense<0.000000e+00> : vector<8xf32>
    %41 = vector.multi_reduction <add>, %40, %cst_16 [1] : vector<8x8xf32> to vector<8xf32>
    %42 = vector.shape_cast %41 : vector<8xf32> to vector<8x1xf32>
    %43 = tpu.reciprocal %42 {approx = true} : vector<8x1xf32> -> vector<8x1xf32>
    %44 = vector.broadcast %43 : vector<8x1xf32> to vector<8x8xf32>
    %45 = arith.mulf %40, %44 : vector<8x8xf32>
    %46 = arith.truncf %45 : vector<8x8xf32> to vector<8x8xbf16>
    %cst_17 = arith.constant dense<0.000000e+00> : vector<8x128xf32>
    %47 = tpu.matmul %46, %33, %cst_17 {dimension_numbers = #tpu.dot_dimension_numbers<[1], [0], [0], [1], [0, 0, 1, 1], [], []>} : vector<8x8xbf16>, vector<8x128xbf16>, vector<8x128xf32> -> vector<8x128xf32>
    %48 = tpu.concatenate %30, %47 in 0 : vector<8x128xf32>, vector<8x128xf32> -> vector<16x128xf32>
    %49 = arith.truncf %48 : vector<16x128xf32> to vector<16x128xbf16>
    %50 = vector.extract_strided_slice %3 {offsets = [0, 128], sizes = [8, 128], strides = [1, 1]} : vector<16x512xbf16> to vector<8x128xbf16>
    %51 = vector.extract_strided_slice %7 {offsets = [0, 128], sizes = [8, 128], strides = [1, 1]} : vector<16x1024xbf16> to vector<8x128xbf16>
    %52 = vector.extract_strided_slice %7 {offsets = [0, 640], sizes = [8, 128], strides = [1, 1]} : vector<16x1024xbf16> to vector<8x128xbf16>
    %cst_18 = arith.constant dense<0.000000e+00> : vector<8x8xf32>
    %53 = tpu.matmul %50, %51, %cst_18 {dimension_numbers = #tpu.dot_dimension_numbers<[1], [1], [0], [0], [0, 0, 1, 0], [], []>} : vector<8x128xbf16>, vector<8x128xbf16>, vector<8x8xf32> -> vector<8x8xf32>
    %54 = arith.addf %53, %13 : vector<8x8xf32>
    %cst_19 = arith.constant dense<0xFF800000> : vector<8xf32>
    %55 = vector.multi_reduction <maximumf>, %54, %cst_19 [1] : vector<8x8xf32> to vector<8xf32>
    %56 = vector.shape_cast %55 : vector<8xf32> to vector<8x1xf32>
    %57 = vector.broadcast %56 : vector<8x1xf32> to vector<8x8xf32>
    %58 = arith.subf %54, %57 : vector<8x8xf32>
    %59 = math.exp %58 : vector<8x8xf32>
    %cst_20 = arith.constant dense<0.000000e+00> : vector<8xf32>
    %60 = vector.multi_reduction <add>, %59, %cst_20 [1] : vector<8x8xf32> to vector<8xf32>
    %61 = vector.shape_cast %60 : vector<8xf32> to vector<8x1xf32>
    %62 = tpu.reciprocal %61 {approx = true} : vector<8x1xf32> -> vector<8x1xf32>
    %63 = vector.broadcast %62 : vector<8x1xf32> to vector<8x8xf32>
    %64 = arith.mulf %59, %63 : vector<8x8xf32>
    %65 = arith.truncf %64 : vector<8x8xf32> to vector<8x8xbf16>
    %cst_21 = arith.constant dense<0.000000e+00> : vector<8x128xf32>
    %66 = tpu.matmul %65, %52, %cst_21 {dimension_numbers = #tpu.dot_dimension_numbers<[1], [0], [0], [1], [0, 0, 1, 1], [], []>} : vector<8x8xbf16>, vector<8x128xbf16>, vector<8x128xf32> -> vector<8x128xf32>
    %67 = vector.extract_strided_slice %3 {offsets = [8, 128], sizes = [8, 128], strides = [1, 1]} : vector<16x512xbf16> to vector<8x128xbf16>
    %68 = vector.extract_strided_slice %7 {offsets = [8, 128], sizes = [8, 128], strides = [1, 1]} : vector<16x1024xbf16> to vector<8x128xbf16>
    %69 = vector.extract_strided_slice %7 {offsets = [8, 640], sizes = [8, 128], strides = [1, 1]} : vector<16x1024xbf16> to vector<8x128xbf16>
    %cst_22 = arith.constant dense<0.000000e+00> : vector<8x8xf32>
    %70 = tpu.matmul %67, %68, %cst_22 {dimension_numbers = #tpu.dot_dimension_numbers<[1], [1], [0], [0], [0, 0, 1, 0], [], []>} : vector<8x128xbf16>, vector<8x128xbf16>, vector<8x8xf32> -> vector<8x8xf32>
    %71 = arith.addf %70, %13 : vector<8x8xf32>
    %cst_23 = arith.constant dense<0xFF800000> : vector<8xf32>
    %72 = vector.multi_reduction <maximumf>, %71, %cst_23 [1] : vector<8x8xf32> to vector<8xf32>
    %73 = vector.shape_cast %72 : vector<8xf32> to vector<8x1xf32>
    %74 = vector.broadcast %73 : vector<8x1xf32> to vector<8x8xf32>
    %75 = arith.subf %71, %74 : vector<8x8xf32>
    %76 = math.exp %75 : vector<8x8xf32>
    %cst_24 = arith.constant dense<0.000000e+00> : vector<8xf32>
    %77 = vector.multi_reduction <add>, %76, %cst_24 [1] : vector<8x8xf32> to vector<8xf32>
    %78 = vector.shape_cast %77 : vector<8xf32> to vector<8x1xf32>
    %79 = tpu.reciprocal %78 {approx = true} : vector<8x1xf32> -> vector<8x1xf32>
    %80 = vector.broadcast %79 : vector<8x1xf32> to vector<8x8xf32>
    %81 = arith.mulf %76, %80 : vector<8x8xf32>
    %82 = arith.truncf %81 : vector<8x8xf32> to vector<8x8xbf16>
    %cst_25 = arith.constant dense<0.000000e+00> : vector<8x128xf32>
    %83 = tpu.matmul %82, %69, %cst_25 {dimension_numbers = #tpu.dot_dimension_numbers<[1], [0], [0], [1], [0, 0, 1, 1], [], []>} : vector<8x8xbf16>, vector<8x128xbf16>, vector<8x128xf32> -> vector<8x128xf32>
    %84 = tpu.concatenate %66, %83 in 0 : vector<8x128xf32>, vector<8x128xf32> -> vector<16x128xf32>
    %85 = arith.truncf %84 : vector<16x128xf32> to vector<16x128xbf16>
    %86 = vector.extract_strided_slice %3 {offsets = [0, 256], sizes = [8, 128], strides = [1, 1]} : vector<16x512xbf16> to vector<8x128xbf16>
    %87 = vector.extract_strided_slice %7 {offsets = [0, 256], sizes = [8, 128], strides = [1, 1]} : vector<16x1024xbf16> to vector<8x128xbf16>
    %88 = vector.extract_strided_slice %7 {offsets = [0, 768], sizes = [8, 128], strides = [1, 1]} : vector<16x1024xbf16> to vector<8x128xbf16>
    %cst_26 = arith.constant dense<0.000000e+00> : vector<8x8xf32>
    %89 = tpu.matmul %86, %87, %cst_26 {dimension_numbers = #tpu.dot_dimension_numbers<[1], [1], [0], [0], [0, 0, 1, 0], [], []>} : vector<8x128xbf16>, vector<8x128xbf16>, vector<8x8xf32> -> vector<8x8xf32>
    %90 = arith.addf %89, %13 : vector<8x8xf32>
    %cst_27 = arith.constant dense<0xFF800000> : vector<8xf32>
    %91 = vector.multi_reduction <maximumf>, %90, %cst_27 [1] : vector<8x8xf32> to vector<8xf32>
    %92 = vector.shape_cast %91 : vector<8xf32> to vector<8x1xf32>
    %93 = vector.broadcast %92 : vector<8x1xf32> to vector<8x8xf32>
    %94 = arith.subf %90, %93 : vector<8x8xf32>
    %95 = math.exp %94 : vector<8x8xf32>
    %cst_28 = arith.constant dense<0.000000e+00> : vector<8xf32>
    %96 = vector.multi_reduction <add>, %95, %cst_28 [1] : vector<8x8xf32> to vector<8xf32>
    %97 = vector.shape_cast %96 : vector<8xf32> to vector<8x1xf32>
    %98 = tpu.reciprocal %97 {approx = true} : vector<8x1xf32> -> vector<8x1xf32>
    %99 = vector.broadcast %98 : vector<8x1xf32> to vector<8x8xf32>
    %100 = arith.mulf %95, %99 : vector<8x8xf32>
    %101 = arith.truncf %100 : vector<8x8xf32> to vector<8x8xbf16>
    %cst_29 = arith.constant dense<0.000000e+00> : vector<8x128xf32>
    %102 = tpu.matmul %101, %88, %cst_29 {dimension_numbers = #tpu.dot_dimension_numbers<[1], [0], [0], [1], [0, 0, 1, 1], [], []>} : vector<8x8xbf16>, vector<8x128xbf16>, vector<8x128xf32> -> vector<8x128xf32>
    %103 = vector.extract_strided_slice %3 {offsets = [8, 256], sizes = [8, 128], strides = [1, 1]} : vector<16x512xbf16> to vector<8x128xbf16>
    %104 = vector.extract_strided_slice %7 {offsets = [8, 256], sizes = [8, 128], strides = [1, 1]} : vector<16x1024xbf16> to vector<8x128xbf16>
    %105 = vector.extract_strided_slice %7 {offsets = [8, 768], sizes = [8, 128], strides = [1, 1]} : vector<16x1024xbf16> to vector<8x128xbf16>
    %cst_30 = arith.constant dense<0.000000e+00> : vector<8x8xf32>
    %106 = tpu.matmul %103, %104, %cst_30 {dimension_numbers = #tpu.dot_dimension_numbers<[1], [1], [0], [0], [0, 0, 1, 0], [], []>} : vector<8x128xbf16>, vector<8x128xbf16>, vector<8x8xf32> -> vector<8x8xf32>
    %107 = arith.addf %106, %13 : vector<8x8xf32>
    %cst_31 = arith.constant dense<0xFF800000> : vector<8xf32>
    %108 = vector.multi_reduction <maximumf>, %107, %cst_31 [1] : vector<8x8xf32> to vector<8xf32>
    %109 = vector.shape_cast %108 : vector<8xf32> to vector<8x1xf32>
    %110 = vector.broadcast %109 : vector<8x1xf32> to vector<8x8xf32>
    %111 = arith.subf %107, %110 : vector<8x8xf32>
    %112 = math.exp %111 : vector<8x8xf32>
    %cst_32 = arith.constant dense<0.000000e+00> : vector<8xf32>
    %113 = vector.multi_reduction <add>, %112, %cst_32 [1] : vector<8x8xf32> to vector<8xf32>
    %114 = vector.shape_cast %113 : vector<8xf32> to vector<8x1xf32>
    %115 = tpu.reciprocal %114 {approx = true} : vector<8x1xf32> -> vector<8x1xf32>
    %116 = vector.broadcast %115 : vector<8x1xf32> to vector<8x8xf32>
    %117 = arith.mulf %112, %116 : vector<8x8xf32>
    %118 = arith.truncf %117 : vector<8x8xf32> to vector<8x8xbf16>
    %cst_33 = arith.constant dense<0.000000e+00> : vector<8x128xf32>
    %119 = tpu.matmul %118, %105, %cst_33 {dimension_numbers = #tpu.dot_dimension_numbers<[1], [0], [0], [1], [0, 0, 1, 1], [], []>} : vector<8x8xbf16>, vector<8x128xbf16>, vector<8x128xf32> -> vector<8x128xf32>
    %120 = tpu.concatenate %102, %119 in 0 : vector<8x128xf32>, vector<8x128xf32> -> vector<16x128xf32>
    %121 = arith.truncf %120 : vector<16x128xf32> to vector<16x128xbf16>
    %122 = vector.extract_strided_slice %3 {offsets = [0, 384], sizes = [8, 128], strides = [1, 1]} : vector<16x512xbf16> to vector<8x128xbf16>
    %123 = vector.extract_strided_slice %7 {offsets = [0, 384], sizes = [8, 128], strides = [1, 1]} : vector<16x1024xbf16> to vector<8x128xbf16>
    %124 = vector.extract_strided_slice %7 {offsets = [0, 896], sizes = [8, 128], strides = [1, 1]} : vector<16x1024xbf16> to vector<8x128xbf16>
    %cst_34 = arith.constant dense<0.000000e+00> : vector<8x8xf32>
    %125 = tpu.matmul %122, %123, %cst_34 {dimension_numbers = #tpu.dot_dimension_numbers<[1], [1], [0], [0], [0, 0, 1, 0], [], []>} : vector<8x128xbf16>, vector<8x128xbf16>, vector<8x8xf32> -> vector<8x8xf32>
    %126 = arith.addf %125, %13 : vector<8x8xf32>
    %cst_35 = arith.constant dense<0xFF800000> : vector<8xf32>
    %127 = vector.multi_reduction <maximumf>, %126, %cst_35 [1] : vector<8x8xf32> to vector<8xf32>
    %128 = vector.shape_cast %127 : vector<8xf32> to vector<8x1xf32>
    %129 = vector.broadcast %128 : vector<8x1xf32> to vector<8x8xf32>
    %130 = arith.subf %126, %129 : vector<8x8xf32>
    %131 = math.exp %130 : vector<8x8xf32>
    %cst_36 = arith.constant dense<0.000000e+00> : vector<8xf32>
    %132 = vector.multi_reduction <add>, %131, %cst_36 [1] : vector<8x8xf32> to vector<8xf32>
    %133 = vector.shape_cast %132 : vector<8xf32> to vector<8x1xf32>
    %134 = tpu.reciprocal %133 {approx = true} : vector<8x1xf32> -> vector<8x1xf32>
    %135 = vector.broadcast %134 : vector<8x1xf32> to vector<8x8xf32>
    %136 = arith.mulf %131, %135 : vector<8x8xf32>
    %137 = arith.truncf %136 : vector<8x8xf32> to vector<8x8xbf16>
    %cst_37 = arith.constant dense<0.000000e+00> : vector<8x128xf32>
    %138 = tpu.matmul %137, %124, %cst_37 {dimension_numbers = #tpu.dot_dimension_numbers<[1], [0], [0], [1], [0, 0, 1, 1], [], []>} : vector<8x8xbf16>, vector<8x128xbf16>, vector<8x128xf32> -> vector<8x128xf32>
    %139 = vector.extract_strided_slice %3 {offsets = [8, 384], sizes = [8, 128], strides = [1, 1]} : vector<16x512xbf16> to vector<8x128xbf16>
    %140 = vector.extract_strided_slice %7 {offsets = [8, 384], sizes = [8, 128], strides = [1, 1]} : vector<16x1024xbf16> to vector<8x128xbf16>
    %141 = vector.extract_strided_slice %7 {offsets = [8, 896], sizes = [8, 128], strides = [1, 1]} : vector<16x1024xbf16> to vector<8x128xbf16>
    %cst_38 = arith.constant dense<0.000000e+00> : vector<8x8xf32>
    %142 = tpu.matmul %139, %140, %cst_38 {dimension_numbers = #tpu.dot_dimension_numbers<[1], [1], [0], [0], [0, 0, 1, 0], [], []>} : vector<8x128xbf16>, vector<8x128xbf16>, vector<8x8xf32> -> vector<8x8xf32>
    %143 = arith.addf %142, %13 : vector<8x8xf32>
    %cst_39 = arith.constant dense<0xFF800000> : vector<8xf32>
    %144 = vector.multi_reduction <maximumf>, %143, %cst_39 [1] : vector<8x8xf32> to vector<8xf32>
    %145 = vector.shape_cast %144 : vector<8xf32> to vector<8x1xf32>
    %146 = vector.broadcast %145 : vector<8x1xf32> to vector<8x8xf32>
    %147 = arith.subf %143, %146 : vector<8x8xf32>
    %148 = math.exp %147 : vector<8x8xf32>
    %cst_40 = arith.constant dense<0.000000e+00> : vector<8xf32>
    %149 = vector.multi_reduction <add>, %148, %cst_40 [1] : vector<8x8xf32> to vector<8xf32>
    %150 = vector.shape_cast %149 : vector<8xf32> to vector<8x1xf32>
    %151 = tpu.reciprocal %150 {approx = true} : vector<8x1xf32> -> vector<8x1xf32>
    %152 = vector.broadcast %151 : vector<8x1xf32> to vector<8x8xf32>
    %153 = arith.mulf %148, %152 : vector<8x8xf32>
    %154 = arith.truncf %153 : vector<8x8xf32> to vector<8x8xbf16>
    %cst_41 = arith.constant dense<0.000000e+00> : vector<8x128xf32>
    %155 = tpu.matmul %154, %141, %cst_41 {dimension_numbers = #tpu.dot_dimension_numbers<[1], [0], [0], [1], [0, 0, 1, 1], [], []>} : vector<8x8xbf16>, vector<8x128xbf16>, vector<8x128xf32> -> vector<8x128xf32>
    %156 = tpu.concatenate %138, %155 in 0 : vector<8x128xf32>, vector<8x128xf32> -> vector<16x128xf32>
    %157 = arith.truncf %156 : vector<16x128xf32> to vector<16x128xbf16>
    %158 = tpu.concatenate %49, %85, %121, %157 in 1 : vector<16x128xbf16>, vector<16x128xbf16>, vector<16x128xbf16>, vector<16x128xbf16> -> vector<16x512xbf16>
    %c0_42 = arith.constant 0 : index
    %c0_43 = arith.constant 0 : index
    %159 = vector.load %arg4[%c0_42, %c0_43] : memref<512x128xbf16, #tpu.memory_space<vmem>>, vector<512x128xbf16>
    %cst_44 = arith.constant dense<0.000000e+00> : vector<16x128xf32>
    %160 = tpu.matmul %158, %159, %cst_44 {dimension_numbers = #tpu.dot_dimension_numbers<[1], [0], [0], [1], [0, 0, 1, 1], [], []>} : vector<16x512xbf16>, vector<512x128xbf16>, vector<16x128xf32> -> vector<16x128xf32>
    %c0_45 = arith.constant 0 : index
    %c0_46 = arith.constant 0 : index
    %161 = vector.load %arg5[%c0_45, %c0_46] : memref<1x128xf32, #tpu.memory_space<vmem>>, vector<1x128xf32>
    %162 = vector.broadcast %161 : vector<1x128xf32> to vector<16x128xf32>
    %163 = arith.addf %160, %162 : vector<16x128xf32>
    %c0_47 = arith.constant 0 : index
    %c0_48 = arith.constant 0 : index
    %164 = vector.load %arg6[%c0_47, %c0_48] : memref<16x128xf32, #tpu.memory_space<vmem>>, vector<16x128xf32>
    tpu.vector_store %arg6[%c0_47, %c0_48], %163 {strides = array<i32>} : memref<16x128xf32, #tpu.memory_space<vmem>>, vector<16x128xf32>,
    return
  }
}

</mosaic_0001>

<llo_original>
// kernel: tpu_custom_call.1
$region0: #{tpu_custom_call.1}
  #allocation0 [shape = 'u32[]', space=smem, size = 0x4, offset = 0x4, fixed_abs, tag = 'smem constant byte address 0x4 - core index']
  #allocation1 [shape = 'u32[72,128]{1,0:T(1,128)}', space=vmem, size = 0x9000, scoped, tag = 'internal scratch']
  %s0 = inlined_call_operand.hbm [shape: bf16[16,32], index: 0, kind: input, shape index: {}]
  %s1 = inlined_call_operand.hbm [shape: bf16[16,32], index: 1, kind: input, shape index: {}]
  %s2 = inlined_call_operand.hbm [shape: bf16[32,512], index: 2, kind: input, shape index: {}]
  %s3 = inlined_call_operand.hbm [shape: bf16[32,1024], index: 3, kind: input, shape index: {}]
  %s4 = inlined_call_operand.hbm [shape: bf16[512,128], index: 4, kind: input, shape index: {}]
  %s5 = inlined_call_operand.vmem [shape: f32[1,128], index: 5, kind: input, shape index: {}]
  %s6 = inlined_call_operand.hbm [shape: f32[16,128], index: 6, kind: output, shape index: {}]
  %s7 = sld [smem:[#allocation0]]
  $region54: #{tpu_custom_call.1} parent=0
    _
  %s9 = ssub.s32 1, %s7
  %s10 = scalar_select 0, %s9, %s7
  $region1: #{tpu_custom_call.1} parent=0
    #allocation2 [shape = 'u8[4096]{0}', space=vmem, size = 0x1000, scoped, tag = 'input window, operand 0, single buffered']
    #allocation3 [shape = 's32[1]{0}', space=sflag, size = 0x4, scoped, tag = 'scoped memory for tpu_custom_call.1']
    #allocation4 [shape = 's32[1]{0}', space=sflag, size = 0x4, scoped, tag = 'scoped memory for tpu_custom_call.1']
    #allocation5 [shape = 'u8[4096]{0}', space=vmem, size = 0x1000, scoped, tag = 'input window, operand 1, single buffered']
    #allocation6 [shape = 's32[1]{0}', space=sflag, size = 0x4, scoped, tag = 'scoped memory for tpu_custom_call.1']
    #allocation7 [shape = 'u8[32768]{0}', space=vmem, size = 0x8000, scoped, tag = 'input window, operand 2, single buffered']
    #allocation8 [shape = 'u8[65536]{0}', space=vmem, size = 0x10000, scoped, tag = 'input window, operand 3, single buffered']
    #allocation9 [shape = 's32[1]{0}', space=sflag, size = 0x4, scoped, tag = 'scoped memory for tpu_custom_call.1']
    #allocation10 [shape = 'u8[131072]{0}', space=vmem, size = 0x20000, scoped, tag = 'input window, operand 4, single buffered']
    #allocation11 [shape = 'u8[8192]{0}', space=vmem, size = 0x2000, scoped, tag = 'output window, operand 0, single buffered']
    %11 = vsyncpa [#allocation3], 0
    %12 = vsyncpa [#allocation6], 0
    %13 = vsyncpa [#allocation9], 0
    %14 = vsyncpa [#allocation4], 0
    // Predicated region
    $region2: #{tpu_custom_call.1} parent=1 // pred_check
      _
    $region3: #{tpu_custom_call.1} parent=1 // pred_check_branch
      %16 = sbr.rel (0) target = $region5
    $region4: #{tpu_custom_call.1} parent=1 // pred_region
      %18 = vsyncadd [#allocation3], 0
      %s19 = sshll.u32 %s0, 4
      %s20 = int_to_ptr.hbm [resolvable:$true] %s19
      %s21 = sshll.u32 [#allocation2], 4
      %s22 = int_to_ptr.vmem [resolvable:$true] %s21
      %27 = dma.hbm_to_vmem [thread:$0]  %s20, 128, %s22, [#allocation3], 64, 64, 4
    $region5: #{tpu_custom_call.1} parent=1 // pred_fallthru
      _
    // Predicated region
    $region6: #{tpu_custom_call.1} parent=1 // pred_check
      _
    $region7: #{tpu_custom_call.1} parent=1 // pred_check_branch
      %29 = sbr.rel (0) target = $region9
    $region8: #{tpu_custom_call.1} parent=1 // pred_region
      %31 = vsyncadd [#allocation6], 0
      %s32 = sshll.u32 %s1, 4
      %s33 = int_to_ptr.hbm [resolvable:$true] %s32
      %s34 = sshll.u32 [#allocation5], 4
      %s35 = int_to_ptr.vmem [resolvable:$true] %s34
      %40 = dma.hbm_to_vmem [thread:$0]  %s33, 128, %s35, [#allocation6], 64, 64, 4
    $region9: #{tpu_custom_call.1} parent=1 // pred_fallthru
      _
    // Predicated region
    $region10: #{tpu_custom_call.1} parent=1 // pred_check
      _
    $region11: #{tpu_custom_call.1} parent=1 // pred_check_branch
      %42 = sbr.rel (0) target = $region13
    $region12: #{tpu_custom_call.1} parent=1 // pred_region
      %44 = vsyncadd [#allocation6], 0
      %s45 = sshll.u32 %s2, 4
      %s46 = int_to_ptr.hbm [resolvable:$true] %s45
      %s47 = sshll.u32 [#allocation7], 4
      %s48 = int_to_ptr.vmem [resolvable:$true] %s47
      %53 = dma.hbm_to_vmem [thread:$0]  %s46, 1024, %s48, [#allocation6], 256, 256, 16
    $region13: #{tpu_custom_call.1} parent=1 // pred_fallthru
      _
    // Predicated region
    $region14: #{tpu_custom_call.1} parent=1 // pred_check
      _
    $region15: #{tpu_custom_call.1} parent=1 // pred_check_branch
      %55 = sbr.rel (0) target = $region17
    $region16: #{tpu_custom_call.1} parent=1 // pred_region
      %57 = vsyncadd [#allocation9], 0
      %s58 = sshll.u32 %s3, 4
      %s59 = int_to_ptr.hbm [resolvable:$true] %s58
      %s60 = sshll.u32 [#allocation8], 4
      %s61 = int_to_ptr.vmem [resolvable:$true] %s60
      %66 = dma.hbm_to_vmem [thread:$0]  %s59, 2048, %s61, [#allocation9], 512, 512, 32
    $region17: #{tpu_custom_call.1} parent=1 // pred_fallthru
      _
    // Predicated region
    $region18: #{tpu_custom_call.1} parent=1 // pred_check
      _
    $region19: #{tpu_custom_call.1} parent=1 // pred_check_branch
      %68 = sbr.rel (0) target = $region21
    $region20: #{tpu_custom_call.1} parent=1 // pred_region
      %70 = vsyncadd [#allocation9], 0
      %s71 = sshll.u32 %s4, 4
      %s72 = int_to_ptr.hbm [resolvable:$true] %s71
      %s73 = sshll.u32 [#allocation10], 4
      %s74 = int_to_ptr.vmem [resolvable:$true] %s73
      %79 = dma.hbm_to_vmem [thread:$0]  %s72, 4096, %s74, [#allocation9], 64, 64, 4
    $region21: #{tpu_custom_call.1} parent=1 // pred_fallthru
      _
    // Predicated region
    $region22: #{tpu_custom_call.1} parent=1 // pred_check
      _
    $region23: #{tpu_custom_call.1} parent=1 // pred_check_branch
      %81 = sbr.rel (0) target = $region25
    $region24: #{tpu_custom_call.1} parent=1 // pred_region
      _
    $region25: #{tpu_custom_call.1} parent=1 // pred_fallthru
      _
    // Predicated region
    $region26: #{tpu_custom_call.1} parent=1 // pred_check
      _
    $region27: #{tpu_custom_call.1} parent=1 // pred_check_branch
      %83 = sbr.rel (0) target = $region29
    $region28: #{tpu_custom_call.1} parent=1 // pred_region
      %85 = dma.done [#allocation3], 128
    $region29: #{tpu_custom_call.1} parent=1 // pred_fallthru
      _
    // Predicated region
    $region30: #{tpu_custom_call.1} parent=1 // pred_check
      _
    $region31: #{tpu_custom_call.1} parent=1 // pred_check_branch
      %87 = sbr.rel (0) target = $region33
    $region32: #{tpu_custom_call.1} parent=1 // pred_region
      %89 = dma.done [#allocation6], 128
    $region33: #{tpu_custom_call.1} parent=1 // pred_fallthru
      _
    // Predicated region
    $region34: #{tpu_custom_call.1} parent=1 // pred_check
      _
    $region35: #{tpu_custom_call.1} parent=1 // pred_check_branch
      %91 = sbr.rel (0) target = $region37
    $region36: #{tpu_custom_call.1} parent=1 // pred_region
      %93 = dma.done [#allocation6], 1024
    $region37: #{tpu_custom_call.1} parent=1 // pred_fallthru
      _
    // Predicated region
    $region38: #{tpu_custom_call.1} parent=1 // pred_check
      _
    $region39: #{tpu_custom_call.1} parent=1 // pred_check_branch
      %95 = sbr.rel (0) target = $region41
    $region40: #{tpu_custom_call.1} parent=1 // pred_region
      %97 = dma.done [#allocation9], 2048
    $region41: #{tpu_custom_call.1} parent=1 // pred_fallthru
      _
    // Predicated region
    $region42: #{tpu_custom_call.1} parent=1 // pred_check
      _
    $region43: #{tpu_custom_call.1} parent=1 // pred_check_branch
      %99 = sbr.rel (0) target = $region45
    $region44: #{tpu_custom_call.1} parent=1 // pred_region
      %101 = dma.done [#allocation9], 4096
    $region45: #{tpu_custom_call.1} parent=1 // pred_fallthru
      _
    %v103 = vld [vmem:[#allocation2] sm:$0xf]
    %v104 = vld [vmem:[#allocation2 + $0x4] sm:$0xf]
    %v105 = vld [vmem:[#allocation7] sm:$0xff]
    %v106 = vld [vmem:[#allocation7 + $0x8] sm:$0xff]
    %v107 = vld [vmem:[#allocation7 + $0x10] sm:$0xff]
    %v108 = vld [vmem:[#allocation7 + $0x18] sm:$0xff]
    %v109 = vld [vmem:[#allocation7 + $0x20] sm:$0xff]
    %v110 = vld [vmem:[#allocation7 + $0x28] sm:$0xff]
    %v111 = vld [vmem:[#allocation7 + $0x30] sm:$0xff]
    %v112 = vld [vmem:[#allocation7 + $0x38] sm:$0xff]
    %v115 = vunpack.c.l.b16 %v103
    %v116 = vunpack.c.l.b16 %v104
    %v117 = vpack.c.b16 %v116, %v115
    %v126 = vunpack.c.l.b16 %v105
    %v127 = vunpack.c.h.b16 %v105
    %v128 = vunpack.c.l.b16 %v106
    %v129 = vunpack.c.h.b16 %v106
    %v130 = vunpack.c.l.b16 %v107
    %v131 = vunpack.c.h.b16 %v107
    %v132 = vunpack.c.l.b16 %v108
    %v133 = vunpack.c.h.b16 %v108
    %v134 = vunpack.c.l.b16 %v109
    %v135 = vunpack.c.h.b16 %v109
    %v136 = vunpack.c.l.b16 %v110
    %v137 = vunpack.c.h.b16 %v110
    %v138 = vunpack.c.l.b16 %v111
    %v139 = vunpack.c.h.b16 %v111
    %v140 = vunpack.c.l.b16 %v112
    %v141 = vunpack.c.h.b16 %v112
    %v142 = vpack.c.b16 %v130, %v126
    %v143 = vpack.c.b16 %v131, %v127
    %v144 = vpack.c.b16 %v132, %v128
    %v145 = vpack.c.b16 %v133, %v129
    %v146 = vpack.c.b16 %v138, %v134
    %v147 = vpack.c.b16 %v139, %v135
    %v148 = vpack.c.b16 %v140, %v136
    %v149 = vpack.c.b16 %v141, %v137
    %vm158 = vcmask 261120
    %v160 = vsel %vm158, %v117, 0
    %162 = vmatpush.bf16.msra.mxu0 0
    %163 = vmatpush.bf16.msra.mxu0 0
    %164 = vmatpush.bf16.msra.mxu0 0
    %165 = vmatpush.bf16.msra.mxu0 0
    %166 = vmatpush.bf16.msra.mxu0 0
    %167 = vmatpush.bf16.msra.mxu0 0
    %168 = vmatpush.bf16.msra.mxu0 %v146
    %169 = vmatpush.bf16.msra.mxu0 %v142
    %170 = vmatmul.bf16.gmra.mxu0 %v160
    %v171 = vpop.f32.mrf.mxu0
    %v172 = vadd.f32 0.0, %v171
    %v173 = vpop.f32.mrf.mxu0
    %v174 = vadd.f32 0.0, %v173
    %175 = vdwg.mxu0
    %176 = vmatpush.bf16.msra.mxu0 0
    %177 = vmatpush.bf16.msra.mxu0 0
    %178 = vmatpush.bf16.msra.mxu0 0
    %179 = vmatpush.bf16.msra.mxu0 0
    %180 = vmatpush.bf16.msra.mxu0 0
    %181 = vmatpush.bf16.msra.mxu0 0
    %182 = vmatpush.bf16.msra.mxu0 %v147
    %183 = vmatpush.bf16.msra.mxu0 %v143
    %184 = vmatmul.bf16.gmra.mxu0 %v160
    %v185 = vpop.f32.mrf.mxu0
    %v186 = vadd.f32 0.0, %v185
    %v187 = vpop.f32.mrf.mxu0
    %v188 = vadd.f32 0.0, %v187
    %189 = vdwg.mxu0
    %190 = vmatpush.bf16.msra.mxu0 0
    %191 = vmatpush.bf16.msra.mxu0 0
    %192 = vmatpush.bf16.msra.mxu0 0
    %193 = vmatpush.bf16.msra.mxu0 0
    %194 = vmatpush.bf16.msra.mxu0 0
    %195 = vmatpush.bf16.msra.mxu0 0
    %196 = vmatpush.bf16.msra.mxu0 %v148
    %197 = vmatpush.bf16.msra.mxu0 %v144
    %198 = vmatmul.bf16.gmra.mxu0 %v160
    %v199 = vpop.f32.mrf.mxu0
    %v200 = vadd.f32 0.0, %v199
    %v201 = vpop.f32.mrf.mxu0
    %v202 = vadd.f32 0.0, %v201
    %203 = vdwg.mxu0
    %204 = vmatpush.bf16.msra.mxu0 0
    %205 = vmatpush.bf16.msra.mxu0 0
    %206 = vmatpush.bf16.msra.mxu0 0
    %207 = vmatpush.bf16.msra.mxu0 0
    %208 = vmatpush.bf16.msra.mxu0 0
    %209 = vmatpush.bf16.msra.mxu0 0
    %210 = vmatpush.bf16.msra.mxu0 %v149
    %211 = vmatpush.bf16.msra.mxu0 %v145
    %212 = vmatmul.bf16.gmra.mxu0 %v160
    %v213 = vpop.f32.mrf.mxu0
    %v214 = vadd.f32 0.0, %v213
    %v215 = vpop.f32.mrf.mxu0
    %v216 = vadd.f32 0.0, %v215
    %217 = vdwg.mxu0
    %v218 = vpack.c.bf16 %v186, %v172
    %v219 = vpack.c.bf16 %v214, %v200
    %v220 = vpack.c.bf16 %v188, %v174
    %v221 = vpack.c.bf16 %v216, %v202
    %v222 = vld [vmem:[#allocation5] sm:$0xf]
    %v223 = vld [vmem:[#allocation5 + $0x4] sm:$0xf]
    %v224 = vld [vmem:[#allocation8] sm:$0xff]
    %v225 = vld [vmem:[#allocation8 + $0x8] sm:$0xff]
    %v226 = vld [vmem:[#allocation8 + $0x10] sm:$0xff]
    %v227 = vld [vmem:[#allocation8 + $0x18] sm:$0xff]
    %v228 = vld [vmem:[#allocation8 + $0x20] sm:$0xff]
    %v229 = vld [vmem:[#allocation8 + $0x28] sm:$0xff]
    %v230 = vld [vmem:[#allocation8 + $0x30] sm:$0xff]
    %v231 = vld [vmem:[#allocation8 + $0x38] sm:$0xff]
    %v232 = vld [vmem:[#allocation8 + $0x40] sm:$0xff]
    %v233 = vld [vmem:[#allocation8 + $0x48] sm:$0xff]
    %v234 = vld [vmem:[#allocation8 + $0x50] sm:$0xff]
    %v235 = vld [vmem:[#allocation8 + $0x58] sm:$0xff]
    %v236 = vld [vmem:[#allocation8 + $0x60] sm:$0xff]
    %v237 = vld [vmem:[#allocation8 + $0x68] sm:$0xff]
    %v238 = vld [vmem:[#allocation8 + $0x70] sm:$0xff]
    %v239 = vld [vmem:[#allocation8 + $0x78] sm:$0xff]
    %v242 = vunpack.c.l.b16 %v222
    %v243 = vunpack.c.l.b16 %v223
    %v244 = vpack.c.b16 %v243, %v242
    %v261 = vunpack.c.l.b16 %v224
    %v262 = vunpack.c.h.b16 %v224
    %v263 = vunpack.c.l.b16 %v225
    %v264 = vunpack.c.h.b16 %v225
    %v265 = vunpack.c.l.b16 %v226
    %v266 = vunpack.c.h.b16 %v226
    %v267 = vunpack.c.l.b16 %v227
    %v268 = vunpack.c.h.b16 %v227
    %v269 = vunpack.c.l.b16 %v228
    %v270 = vunpack.c.h.b16 %v228
    %v271 = vunpack.c.l.b16 %v229
    %v272 = vunpack.c.h.b16 %v229
    %v273 = vunpack.c.l.b16 %v230
    %v274 = vunpack.c.h.b16 %v230
    %v275 = vunpack.c.l.b16 %v231
    %v276 = vunpack.c.h.b16 %v231
    %v277 = vunpack.c.l.b16 %v232
    %v278 = vunpack.c.h.b16 %v232
    %v279 = vunpack.c.l.b16 %v233
    %v280 = vunpack.c.h.b16 %v233
    %v281 = vunpack.c.l.b16 %v234
    %v282 = vunpack.c.h.b16 %v234
    %v283 = vunpack.c.l.b16 %v235
    %v284 = vunpack.c.h.b16 %v235
    %v285 = vunpack.c.l.b16 %v236
    %v286 = vunpack.c.h.b16 %v236
    %v287 = vunpack.c.l.b16 %v237
    %v288 = vunpack.c.h.b16 %v237
    %v289 = vunpack.c.l.b16 %v238
    %v290 = vunpack.c.h.b16 %v238
    %v291 = vunpack.c.l.b16 %v239
    %v292 = vunpack.c.h.b16 %v239
    %v293 = vpack.c.b16 %v269, %v261
    %v294 = vpack.c.b16 %v270, %v262
    %v295 = vpack.c.b16 %v271, %v263
    %v296 = vpack.c.b16 %v272, %v264
    %v297 = vpack.c.b16 %v273, %v265
    %v298 = vpack.c.b16 %v274, %v266
    %v299 = vpack.c.b16 %v275, %v267
    %v300 = vpack.c.b16 %v276, %v268
    %v301 = vpack.c.b16 %v285, %v277
    %v302 = vpack.c.b16 %v286, %v278
    %v303 = vpack.c.b16 %v287, %v279
    %v304 = vpack.c.b16 %v288, %v280
    %v305 = vpack.c.b16 %v289, %v281
    %v306 = vpack.c.b16 %v290, %v282
    %v307 = vpack.c.b16 %v291, %v283
    %v308 = vpack.c.b16 %v292, %v284
    %v326 = vsel %vm158, %v244, 0
    %328 = vmatpush.bf16.msra.mxu0 0
    %329 = vmatpush.bf16.msra.mxu0 0
    %330 = vmatpush.bf16.msra.mxu0 0
    %331 = vmatpush.bf16.msra.mxu0 0
    %332 = vmatpush.bf16.msra.mxu0 0
    %333 = vmatpush.bf16.msra.mxu0 0
    %334 = vmatpush.bf16.msra.mxu0 %v301
    %335 = vmatpush.bf16.msra.mxu0 %v293
    %336 = vmatmul.bf16.gmra.mxu0 %v326
    %v337 = vpop.f32.mrf.mxu0
    %v338 = vadd.f32 0.0, %v337
    %v339 = vpop.f32.mrf.mxu0
    %v340 = vadd.f32 0.0, %v339
    %341 = vdwg.mxu0
    %342 = vmatpush.bf16.msra.mxu0 0
    %343 = vmatpush.bf16.msra.mxu0 0
    %344 = vmatpush.bf16.msra.mxu0 0
    %345 = vmatpush.bf16.msra.mxu0 0
    %346 = vmatpush.bf16.msra.mxu0 0
    %347 = vmatpush.bf16.msra.mxu0 0
    %348 = vmatpush.bf16.msra.mxu0 %v302
    %349 = vmatpush.bf16.msra.mxu0 %v294
    %350 = vmatmul.bf16.gmra.mxu0 %v326
    %v351 = vpop.f32.mrf.mxu0
    %v352 = vadd.f32 0.0, %v351
    %v353 = vpop.f32.mrf.mxu0
    %v354 = vadd.f32 0.0, %v353
    %355 = vdwg.mxu0
    %356 = vmatpush.bf16.msra.mxu0 0
    %357 = vmatpush.bf16.msra.mxu0 0
    %358 = vmatpush.bf16.msra.mxu0 0
    %359 = vmatpush.bf16.msra.mxu0 0
    %360 = vmatpush.bf16.msra.mxu0 0
    %361 = vmatpush.bf16.msra.mxu0 0
    %362 = vmatpush.bf16.msra.mxu0 %v303
    %363 = vmatpush.bf16.msra.mxu0 %v295
    %364 = vmatmul.bf16.gmra.mxu0 %v326
    %v365 = vpop.f32.mrf.mxu0
    %v366 = vadd.f32 0.0, %v365
    %v367 = vpop.f32.mrf.mxu0
    %v368 = vadd.f32 0.0, %v367
    %369 = vdwg.mxu0
    %370 = vmatpush.bf16.msra.mxu0 0
    %371 = vmatpush.bf16.msra.mxu0 0
    %372 = vmatpush.bf16.msra.mxu0 0
    %373 = vmatpush.bf16.msra.mxu0 0
    %374 = vmatpush.bf16.msra.mxu0 0
    %375 = vmatpush.bf16.msra.mxu0 0
    %376 = vmatpush.bf16.msra.mxu0 %v304
    %377 = vmatpush.bf16.msra.mxu0 %v296
    %378 = vmatmul.bf16.gmra.mxu0 %v326
    %v379 = vpop.f32.mrf.mxu0
    %v380 = vadd.f32 0.0, %v379
    %v381 = vpop.f32.mrf.mxu0
    %v382 = vadd.f32 0.0, %v381
    %383 = vdwg.mxu0
    %384 = vmatpush.bf16.msra.mxu0 0
    %385 = vmatpush.bf16.msra.mxu0 0
    %386 = vmatpush.bf16.msra.mxu0 0
    %387 = vmatpush.bf16.msra.mxu0 0
    %388 = vmatpush.bf16.msra.mxu0 0
    %389 = vmatpush.bf16.msra.mxu0 0
    %390 = vmatpush.bf16.msra.mxu0 %v305
    %391 = vmatpush.bf16.msra.mxu0 %v297
    %392 = vmatmul.bf16.gmra.mxu0 %v326
    %v393 = vpop.f32.mrf.mxu0
    %v394 = vadd.f32 0.0, %v393
    %v395 = vpop.f32.mrf.mxu0
    %v396 = vadd.f32 0.0, %v395
    %397 = vdwg.mxu0
    %398 = vmatpush.bf16.msra.mxu0 0
    %399 = vmatpush.bf16.msra.mxu0 0
    %400 = vmatpush.bf16.msra.mxu0 0
    %401 = vmatpush.bf16.msra.mxu0 0
    %402 = vmatpush.bf16.msra.mxu0 0
    %403 = vmatpush.bf16.msra.mxu0 0
    %404 = vmatpush.bf16.msra.mxu0 %v306
    %405 = vmatpush.bf16.msra.mxu0 %v298
    %406 = vmatmul.bf16.gmra.mxu0 %v326
    %v407 = vpop.f32.mrf.mxu0
    %v408 = vadd.f32 0.0, %v407
    %v409 = vpop.f32.mrf.mxu0
    %v410 = vadd.f32 0.0, %v409
    %411 = vdwg.mxu0
    %412 = vmatpush.bf16.msra.mxu0 0
    %413 = vmatpush.bf16.msra.mxu0 0
    %414 = vmatpush.bf16.msra.mxu0 0
    %415 = vmatpush.bf16.msra.mxu0 0
    %416 = vmatpush.bf16.msra.mxu0 0
    %417 = vmatpush.bf16.msra.mxu0 0
    %418 = vmatpush.bf16.msra.mxu0 %v307
    %419 = vmatpush.bf16.msra.mxu0 %v299
    %420 = vmatmul.bf16.gmra.mxu0 %v326
    %v421 = vpop.f32.mrf.mxu0
    %v422 = vadd.f32 0.0, %v421
    %v423 = vpop.f32.mrf.mxu0
    %v424 = vadd.f32 0.0, %v423
    %425 = vdwg.mxu0
    %426 = vmatpush.bf16.msra.mxu0 0
    %427 = vmatpush.bf16.msra.mxu0 0
    %428 = vmatpush.bf16.msra.mxu0 0
    %429 = vmatpush.bf16.msra.mxu0 0
    %430 = vmatpush.bf16.msra.mxu0 0
    %431 = vmatpush.bf16.msra.mxu0 0
    %432 = vmatpush.bf16.msra.mxu0 %v308
    %433 = vmatpush.bf16.msra.mxu0 %v300
    %434 = vmatmul.bf16.gmra.mxu0 %v326
    %v435 = vpop.f32.mrf.mxu0
    %v436 = vadd.f32 0.0, %v435
    %v437 = vpop.f32.mrf.mxu0
    %v438 = vadd.f32 0.0, %v437
    %439 = vdwg.mxu0
    %v440 = vpack.c.bf16 %v352, %v338
    %v441 = vpack.c.bf16 %v380, %v366
    %v442 = vpack.c.bf16 %v408, %v394
    %v443 = vpack.c.bf16 %v436, %v422
    %v444 = vpack.c.bf16 %v354, %v340
    %v445 = vpack.c.bf16 %v382, %v368
    %v446 = vpack.c.bf16 %v410, %v396
    %v447 = vpack.c.bf16 %v438, %v424
    %v448 = vlaneseq
    %v449 = vshrl.u32 %v448, 7
    %v450 = vlaneseq
    %v451 = vand.u32 %v450, 127
    %vm452 = vcmp.le.s32.totalorder %v451, %v449
    %v453 = vsel %vm452, 0.0, -1e+30
    %454 = vmatpush.bf16.xpose.msra.mxu0 0
    %455 = vmatpush.bf16.xpose.msra.mxu0 0
    %456 = vmatpush.bf16.xpose.msra.mxu0 0
    %457 = vmatpush.bf16.xpose.msra.mxu0 0
    %458 = vmatpush.bf16.xpose.msra.mxu0 0
    %459 = vmatpush.bf16.xpose.msra.mxu0 0
    %460 = vmatpush.bf16.xpose.msra.mxu0 0
    %461 = vmatpush.bf16.xpose.msra.mxu0 %v440
    %462 = vmatmul.bf16.gmra.mxu0 %v218
    %v463 = vpop.f32.mrf.mxu0
    %v464 = vadd.f32 %v453, %v463
    %v465 = vpop.f32.mrf.mxu0
    %466 = vdwg.mxu0
    %vm467 = vcmask 64512
    %v468 = vsel %vm467, %v464, -inf
    %469 = vmax.xlane.f32.xlu0 %v468
    %v470 = vpop.xlane.xlu0 %469
    %v471 = vsub.f32 %v464, %v470
    %v472 = vmul.f32 %v471, 1.442695
    %v473 = vpow.pop %v472
    %v474 = vsel %vm467, %v473, 0.0
    %475 = vadd.xlane.f32.xlu0 %v474
    %v476 = vpop.xlane.xlu0 %475
    %v477 = vrcp.pop %v476
    %v478 = vmul.f32 %v473, %v477
    %v479 = vpack.c.bf16 %v478, %v478
    %v481 = vsel %vm467, %v479, 0
    %vm483 = vcmask 1043456
    %v485 = vsel %vm483, %v442, 0
    %487 = vmatpush.bf16.msra.mxu0 0
    %488 = vmatpush.bf16.msra.mxu0 0
    %489 = vmatpush.bf16.msra.mxu0 0
    %490 = vmatpush.bf16.msra.mxu0 0
    %491 = vmatpush.bf16.msra.mxu0 0
    %492 = vmatpush.bf16.msra.mxu0 0
    %493 = vmatpush.bf16.msra.mxu0 0
    %494 = vmatpush.bf16.msra.mxu0 %v485
    %495 = vmatmul.bf16.gmra.mxu0 %v481
    %v496 = vpop.f32.mrf.mxu0
    %v497 = vadd.f32 0.0, %v496
    %v498 = vpop.f32.mrf.mxu0
    %499 = vdwg.mxu0
    %500 = vmatpush.bf16.xpose.msra.mxu0 0
    %501 = vmatpush.bf16.xpose.msra.mxu0 0
    %502 = vmatpush.bf16.xpose.msra.mxu0 0
    %503 = vmatpush.bf16.xpose.msra.mxu0 0
    %504 = vmatpush.bf16.xpose.msra.mxu0 0
    %505 = vmatpush.bf16.xpose.msra.mxu0 0
    %506 = vmatpush.bf16.xpose.msra.mxu0 0
    %507 = vmatpush.bf16.xpose.msra.mxu0 %v444
    %508 = vmatmul.bf16.gmra.mxu0 %v220
    %v509 = vpop.f32.mrf.mxu0
    %v510 = vadd.f32 %v453, %v509
    %v511 = vpop.f32.mrf.mxu0
    %512 = vdwg.mxu0
    %v513 = vsel %vm467, %v510, -inf
    %514 = vmax.xlane.f32.xlu0 %v513
    %v515 = vpop.xlane.xlu0 %514
    %v516 = vsub.f32 %v510, %v515
    %v517 = vmul.f32 %v516, 1.442695
    %v518 = vpow.pop %v517
    %v519 = vsel %vm467, %v518, 0.0
    %520 = vadd.xlane.f32.xlu0 %v519
    %v521 = vpop.xlane.xlu0 %520
    %v522 = vrcp.pop %v521
    %v523 = vmul.f32 %v518, %v522
    %v524 = vpack.c.bf16 %v523, %v523
    %v526 = vsel %vm467, %v524, 0
    %v529 = vsel %vm483, %v446, 0
    %531 = vmatpush.bf16.msra.mxu0 0
    %532 = vmatpush.bf16.msra.mxu0 0
    %533 = vmatpush.bf16.msra.mxu0 0
    %534 = vmatpush.bf16.msra.mxu0 0
    %535 = vmatpush.bf16.msra.mxu0 0
    %536 = vmatpush.bf16.msra.mxu0 0
    %537 = vmatpush.bf16.msra.mxu0 0
    %538 = vmatpush.bf16.msra.mxu0 %v529
    %539 = vmatmul.bf16.gmra.mxu0 %v526
    %v540 = vpop.f32.mrf.mxu0
    %v541 = vadd.f32 0.0, %v540
    %v542 = vpop.f32.mrf.mxu0
    %543 = vdwg.mxu0
    %v544 = vpack.c.bf16 %v497, %v497
    %v545 = vpack.c.bf16 %v541, %v541
    %v547 = vunpack.c.h.b16 %v218
    %v548 = vpack.c.b16 %v547, %v547
    %v551 = vunpack.c.h.b16 %v440
    %v552 = vpack.c.b16 %v551, %v551
    %554 = vmatpush.bf16.xpose.msra.mxu0 0
    %555 = vmatpush.bf16.xpose.msra.mxu0 0
    %556 = vmatpush.bf16.xpose.msra.mxu0 0
    %557 = vmatpush.bf16.xpose.msra.mxu0 0
    %558 = vmatpush.bf16.xpose.msra.mxu0 0
    %559 = vmatpush.bf16.xpose.msra.mxu0 0
    %560 = vmatpush.bf16.xpose.msra.mxu0 0
    %561 = vmatpush.bf16.xpose.msra.mxu0 %v552
    %562 = vmatmul.bf16.gmra.mxu0 %v548
    %v563 = vpop.f32.mrf.mxu0
    %v564 = vadd.f32 %v453, %v563
    %v565 = vpop.f32.mrf.mxu0
    %566 = vdwg.mxu0
    %v567 = vsel %vm467, %v564, -inf
    %568 = vmax.xlane.f32.xlu0 %v567
    %v569 = vpop.xlane.xlu0 %568
    %v570 = vsub.f32 %v564, %v569
    %v571 = vmul.f32 %v570, 1.442695
    %v572 = vpow.pop %v571
    %v573 = vsel %vm467, %v572, 0.0
    %574 = vadd.xlane.f32.xlu0 %v573
    %v575 = vpop.xlane.xlu0 %574
    %v576 = vrcp.pop %v575
    %v577 = vmul.f32 %v572, %v576
    %v578 = vpack.c.bf16 %v577, %v577
    %v580 = vunpack.c.h.b16 %v442
    %v581 = vpack.c.b16 %v580, %v580
    %v583 = vsel %vm467, %v578, 0
    %v586 = vsel %vm483, %v581, 0
    %588 = vmatpush.bf16.msra.mxu0 0
    %589 = vmatpush.bf16.msra.mxu0 0
    %590 = vmatpush.bf16.msra.mxu0 0
    %591 = vmatpush.bf16.msra.mxu0 0
    %592 = vmatpush.bf16.msra.mxu0 0
    %593 = vmatpush.bf16.msra.mxu0 0
    %594 = vmatpush.bf16.msra.mxu0 0
    %595 = vmatpush.bf16.msra.mxu0 %v586
    %596 = vmatmul.bf16.gmra.mxu0 %v583
    %v597 = vpop.f32.mrf.mxu0
    %v598 = vadd.f32 0.0, %v597
    %v599 = vpop.f32.mrf.mxu0
    %600 = vdwg.mxu0
    %v602 = vunpack.c.h.b16 %v220
    %v603 = vpack.c.b16 %v602, %v602
    %v606 = vunpack.c.h.b16 %v444
    %v607 = vpack.c.b16 %v606, %v606
    %609 = vmatpush.bf16.xpose.msra.mxu0 0
    %610 = vmatpush.bf16.xpose.msra.mxu0 0
    %611 = vmatpush.bf16.xpose.msra.mxu0 0
    %612 = vmatpush.bf16.xpose.msra.mxu0 0
    %613 = vmatpush.bf16.xpose.msra.mxu0 0
    %614 = vmatpush.bf16.xpose.msra.mxu0 0
    %615 = vmatpush.bf16.xpose.msra.mxu0 0
    %616 = vmatpush.bf16.xpose.msra.mxu0 %v607
    %617 = vmatmul.bf16.gmra.mxu0 %v603
    %v618 = vpop.f32.mrf.mxu0
    %v619 = vadd.f32 %v453, %v618
    %v620 = vpop.f32.mrf.mxu0
    %621 = vdwg.mxu0
    %v622 = vsel %vm467, %v619, -inf
    %623 = vmax.xlane.f32.xlu0 %v622
    %v624 = vpop.xlane.xlu0 %623
    %v625 = vsub.f32 %v619, %v624
    %v626 = vmul.f32 %v625, 1.442695
    %v627 = vpow.pop %v626
    %v628 = vsel %vm467, %v627, 0.0
    %629 = vadd.xlane.f32.xlu0 %v628
    %v630 = vpop.xlane.xlu0 %629
    %v631 = vrcp.pop %v630
    %v632 = vmul.f32 %v627, %v631
    %v633 = vpack.c.bf16 %v632, %v632
    %v635 = vunpack.c.h.b16 %v446
    %v636 = vpack.c.b16 %v635, %v635
    %v638 = vsel %vm467, %v633, 0
    %v641 = vsel %vm483, %v636, 0
    %643 = vmatpush.bf16.msra.mxu0 0
    %644 = vmatpush.bf16.msra.mxu0 0
    %645 = vmatpush.bf16.msra.mxu0 0
    %646 = vmatpush.bf16.msra.mxu0 0
    %647 = vmatpush.bf16.msra.mxu0 0
    %648 = vmatpush.bf16.msra.mxu0 0
    %649 = vmatpush.bf16.msra.mxu0 0
    %650 = vmatpush.bf16.msra.mxu0 %v641
    %651 = vmatmul.bf16.gmra.mxu0 %v638
    %v652 = vpop.f32.mrf.mxu0
    %v653 = vadd.f32 0.0, %v652
    %v654 = vpop.f32.mrf.mxu0
    %655 = vdwg.mxu0
    %v656 = vpack.c.bf16 %v598, %v598
    %v657 = vpack.c.bf16 %v653, %v653
    %658 = vmatpush.bf16.xpose.msra.mxu0 0
    %659 = vmatpush.bf16.xpose.msra.mxu0 0
    %660 = vmatpush.bf16.xpose.msra.mxu0 0
    %661 = vmatpush.bf16.xpose.msra.mxu0 0
    %662 = vmatpush.bf16.xpose.msra.mxu0 0
    %663 = vmatpush.bf16.xpose.msra.mxu0 0
    %664 = vmatpush.bf16.xpose.msra.mxu0 0
    %665 = vmatpush.bf16.xpose.msra.mxu0 %v441
    %666 = vmatmul.bf16.gmra.mxu0 %v219
    %v667 = vpop.f32.mrf.mxu0
    %v668 = vadd.f32 %v453, %v667
    %v669 = vpop.f32.mrf.mxu0
    %670 = vdwg.mxu0
    %v671 = vsel %vm467, %v668, -inf
    %672 = vmax.xlane.f32.xlu0 %v671
    %v673 = vpop.xlane.xlu0 %672
    %v674 = vsub.f32 %v668, %v673
    %v675 = vmul.f32 %v674, 1.442695
    %v676 = vpow.pop %v675
    %v677 = vsel %vm467, %v676, 0.0
    %678 = vadd.xlane.f32.xlu0 %v677
    %v679 = vpop.xlane.xlu0 %678
    %v680 = vrcp.pop %v679
    %v681 = vmul.f32 %v676, %v680
    %v682 = vpack.c.bf16 %v681, %v681
    %v684 = vsel %vm467, %v682, 0
    %v687 = vsel %vm483, %v443, 0
    %689 = vmatpush.bf16.msra.mxu0 0
    %690 = vmatpush.bf16.msra.mxu0 0
    %691 = vmatpush.bf16.msra.mxu0 0
    %692 = vmatpush.bf16.msra.mxu0 0
    %693 = vmatpush.bf16.msra.mxu0 0
    %694 = vmatpush.bf16.msra.mxu0 0
    %695 = vmatpush.bf16.msra.mxu0 0
    %696 = vmatpush.bf16.msra.mxu0 %v687
    %697 = vmatmul.bf16.gmra.mxu0 %v684
    %v698 = vpop.f32.mrf.mxu0
    %v699 = vadd.f32 0.0, %v698
    %v700 = vpop.f32.mrf.mxu0
    %701 = vdwg.mxu0
    %702 = vmatpush.bf16.xpose.msra.mxu0 0
    %703 = vmatpush.bf16.xpose.msra.mxu0 0
    %704 = vmatpush.bf16.xpose.msra.mxu0 0
    %705 = vmatpush.bf16.xpose.msra.mxu0 0
    %706 = vmatpush.bf16.xpose.msra.mxu0 0
    %707 = vmatpush.bf16.xpose.msra.mxu0 0
    %708 = vmatpush.bf16.xpose.msra.mxu0 0
    %709 = vmatpush.bf16.xpose.msra.mxu0 %v445
    %710 = vmatmul.bf16.gmra.mxu0 %v221
    %v711 = vpop.f32.mrf.mxu0
    %v712 = vadd.f32 %v453, %v711
    %v713 = vpop.f32.mrf.mxu0
    %714 = vdwg.mxu0
    %v715 = vsel %vm467, %v712, -inf
    %716 = vmax.xlane.f32.xlu0 %v715
    %v717 = vpop.xlane.xlu0 %716
    %v718 = vsub.f32 %v712, %v717
    %v719 = vmul.f32 %v718, 1.442695
    %v720 = vpow.pop %v719
    %v721 = vsel %vm467, %v720, 0.0
    %722 = vadd.xlane.f32.xlu0 %v721
    %v723 = vpop.xlane.xlu0 %722
    %v724 = vrcp.pop %v723
    %v725 = vmul.f32 %v720, %v724
    %v726 = vpack.c.bf16 %v725, %v725
    %v728 = vsel %vm467, %v726, 0
    %v731 = vsel %vm483, %v447, 0
    %733 = vmatpush.bf16.msra.mxu0 0
    %734 = vmatpush.bf16.msra.mxu0 0
    %735 = vmatpush.bf16.msra.mxu0 0
    %736 = vmatpush.bf16.msra.mxu0 0
    %737 = vmatpush.bf16.msra.mxu0 0
    %738 = vmatpush.bf16.msra.mxu0 0
    %739 = vmatpush.bf16.msra.mxu0 0
    %740 = vmatpush.bf16.msra.mxu0 %v731
    %741 = vmatmul.bf16.gmra.mxu0 %v728
    %v742 = vpop.f32.mrf.mxu0
    %v743 = vadd.f32 0.0, %v742
    %v744 = vpop.f32.mrf.mxu0
    %745 = vdwg.mxu0
    %v746 = vpack.c.bf16 %v699, %v699
    %v747 = vpack.c.bf16 %v743, %v743
    %v749 = vunpack.c.h.b16 %v219
    %v750 = vpack.c.b16 %v749, %v749
    %v753 = vunpack.c.h.b16 %v441
    %v754 = vpack.c.b16 %v753, %v753
    %756 = vmatpush.bf16.xpose.msra.mxu0 0
    %757 = vmatpush.bf16.xpose.msra.mxu0 0
    %758 = vmatpush.bf16.xpose.msra.mxu0 0
    %759 = vmatpush.bf16.xpose.msra.mxu0 0
    %760 = vmatpush.bf16.xpose.msra.mxu0 0
    %761 = vmatpush.bf16.xpose.msra.mxu0 0
    %762 = vmatpush.bf16.xpose.msra.mxu0 0
    %763 = vmatpush.bf16.xpose.msra.mxu0 %v754
    %764 = vmatmul.bf16.gmra.mxu0 %v750
    %v765 = vpop.f32.mrf.mxu0
    %v766 = vadd.f32 %v453, %v765
    %v767 = vpop.f32.mrf.mxu0
    %768 = vdwg.mxu0
    %v769 = vsel %vm467, %v766, -inf
    %770 = vmax.xlane.f32.xlu0 %v769
    %v771 = vpop.xlane.xlu0 %770
    %v772 = vsub.f32 %v766, %v771
    %v773 = vmul.f32 %v772, 1.442695
    %v774 = vpow.pop %v773
    %v775 = vsel %vm467, %v774, 0.0
    %776 = vadd.xlane.f32.xlu0 %v775
    %v777 = vpop.xlane.xlu0 %776
    %v778 = vrcp.pop %v777
    %v779 = vmul.f32 %v774, %v778
    %v780 = vpack.c.bf16 %v779, %v779
    %v782 = vunpack.c.h.b16 %v443
    %v783 = vpack.c.b16 %v782, %v782
    %v785 = vsel %vm467, %v780, 0
    %v788 = vsel %vm483, %v783, 0
    %790 = vmatpush.bf16.msra.mxu0 0
    %791 = vmatpush.bf16.msra.mxu0 0
    %792 = vmatpush.bf16.msra.mxu0 0
    %793 = vmatpush.bf16.msra.mxu0 0
    %794 = vmatpush.bf16.msra.mxu0 0
    %795 = vmatpush.bf16.msra.mxu0 0
    %796 = vmatpush.bf16.msra.mxu0 0
    %797 = vmatpush.bf16.msra.mxu0 %v788
    %798 = vmatmul.bf16.gmra.mxu0 %v785
    %v799 = vpop.f32.mrf.mxu0
    %v800 = vadd.f32 0.0, %v799
    %v801 = vpop.f32.mrf.mxu0
    %802 = vdwg.mxu0
    %v804 = vunpack.c.h.b16 %v221
    %v805 = vpack.c.b16 %v804, %v804
    %v808 = vunpack.c.h.b16 %v445
    %v809 = vpack.c.b16 %v808, %v808
    %811 = vmatpush.bf16.xpose.msra.mxu0 0
    %812 = vmatpush.bf16.xpose.msra.mxu0 0
    %813 = vmatpush.bf16.xpose.msra.mxu0 0
    %814 = vmatpush.bf16.xpose.msra.mxu0 0
    %815 = vmatpush.bf16.xpose.msra.mxu0 0
    %816 = vmatpush.bf16.xpose.msra.mxu0 0
    %817 = vmatpush.bf16.xpose.msra.mxu0 0
    %818 = vmatpush.bf16.xpose.msra.mxu0 %v809
    %819 = vmatmul.bf16.gmra.mxu0 %v805
    %v820 = vpop.f32.mrf.mxu0
    %v821 = vadd.f32 %v453, %v820
    %v822 = vpop.f32.mrf.mxu0
    %823 = vdwg.mxu0
    %v824 = vsel %vm467, %v821, -inf
    %825 = vmax.xlane.f32.xlu0 %v824
    %v826 = vpop.xlane.xlu0 %825
    %v827 = vsub.f32 %v821, %v826
    %v828 = vmul.f32 %v827, 1.442695
    %v829 = vpow.pop %v828
    %v830 = vsel %vm467, %v829, 0.0
    %831 = vadd.xlane.f32.xlu0 %v830
    %v832 = vpop.xlane.xlu0 %831
    %v833 = vrcp.pop %v832
    %v834 = vmul.f32 %v829, %v833
    %v835 = vpack.c.bf16 %v834, %v834
    %v837 = vunpack.c.h.b16 %v447
    %v838 = vpack.c.b16 %v837, %v837
    %v840 = vsel %vm467, %v835, 0
    %v843 = vsel %vm483, %v838, 0
    %845 = vmatpush.bf16.msra.mxu0 0
    %846 = vmatpush.bf16.msra.mxu0 0
    %847 = vmatpush.bf16.msra.mxu0 0
    %848 = vmatpush.bf16.msra.mxu0 0
    %849 = vmatpush.bf16.msra.mxu0 0
    %850 = vmatpush.bf16.msra.mxu0 0
    %851 = vmatpush.bf16.msra.mxu0 0
    %852 = vmatpush.bf16.msra.mxu0 %v843
    %853 = vmatmul.bf16.gmra.mxu0 %v840
    %v854 = vpop.f32.mrf.mxu0
    %v855 = vadd.f32 0.0, %v854
    %v856 = vpop.f32.mrf.mxu0
    %857 = vdwg.mxu0
    %v858 = vpack.c.bf16 %v800, %v800
    %v859 = vpack.c.bf16 %v855, %v855
    %v862 = vunpack.c.l.b16 %v544
    %v863 = vunpack.c.l.b16 %v545
    %v864 = vpack.c.b16 %v863, %v862
    %v868 = vunpack.c.l.b16 %v656
    %v869 = vunpack.c.l.b16 %v657
    %v870 = vpack.c.b16 %v869, %v868
    %v874 = vunpack.c.l.b16 %v746
    %v875 = vunpack.c.l.b16 %v747
    %v876 = vpack.c.b16 %v875, %v874
    %v880 = vunpack.c.l.b16 %v858
    %v881 = vunpack.c.l.b16 %v859
    %v882 = vpack.c.b16 %v881, %v880
    %v884 = vld [vmem:[#allocation10] sm:$0xf]
    %v885 = vld [vmem:[#allocation10 + $0x4] sm:$0xf]
    %v886 = vld [vmem:[#allocation10 + $0x8] sm:$0xf]
    %v887 = vld [vmem:[#allocation10 + $0xc] sm:$0xf]
    %v888 = vld [vmem:[#allocation10 + $0x10] sm:$0xf]
    %v889 = vld [vmem:[#allocation10 + $0x14] sm:$0xf]
    %v890 = vld [vmem:[#allocation10 + $0x18] sm:$0xf]
    %v891 = vld [vmem:[#allocation10 + $0x1c] sm:$0xf]
    %v892 = vld [vmem:[#allocation10 + $0x20] sm:$0xf]
    %v893 = vld [vmem:[#allocation10 + $0x24] sm:$0xf]
    %v894 = vld [vmem:[#allocation10 + $0x28] sm:$0xf]
    %v895 = vld [vmem:[#allocation10 + $0x2c] sm:$0xf]
    %v896 = vld [vmem:[#allocation10 + $0x30] sm:$0xf]
    %v897 = vld [vmem:[#allocation10 + $0x34] sm:$0xf]
    %v898 = vld [vmem:[#allocation10 + $0x38] sm:$0xf]
    %v899 = vld [vmem:[#allocation10 + $0x3c] sm:$0xf]
    %v900 = vld [vmem:[#allocation10 + $0x40] sm:$0xf]
    %v901 = vld [vmem:[#allocation10 + $0x44] sm:$0xf]
    %v902 = vld [vmem:[#allocation10 + $0x48] sm:$0xf]
    %v903 = vld [vmem:[#allocation10 + $0x4c] sm:$0xf]
    %v904 = vld [vmem:[#allocation10 + $0x50] sm:$0xf]
    %v905 = vld [vmem:[#allocation10 + $0x54] sm:$0xf]
    %v906 = vld [vmem:[#allocation10 + $0x58] sm:$0xf]
    %v907 = vld [vmem:[#allocation10 + $0x5c] sm:$0xf]
    %v908 = vld [vmem:[#allocation10 + $0x60] sm:$0xf]
    %v909 = vld [vmem:[#allocation10 + $0x64] sm:$0xf]
    %v910 = vld [vmem:[#allocation10 + $0x68] sm:$0xf]
    %v911 = vld [vmem:[#allocation10 + $0x6c] sm:$0xf]
    %v912 = vld [vmem:[#allocation10 + $0x70] sm:$0xf]
    %v913 = vld [vmem:[#allocation10 + $0x74] sm:$0xf]
    %v914 = vld [vmem:[#allocation10 + $0x78] sm:$0xf]
    %v915 = vld [vmem:[#allocation10 + $0x7c] sm:$0xf]
    %v916 = vld [vmem:[#allocation10 + $0x80] sm:$0xf]
    %v917 = vld [vmem:[#allocation10 + $0x84] sm:$0xf]
    %v918 = vld [vmem:[#allocation10 + $0x88] sm:$0xf]
    %v919 = vld [vmem:[#allocation10 + $0x8c] sm:$0xf]
    %v920 = vld [vmem:[#allocation10 + $0x90] sm:$0xf]
    %v921 = vld [vmem:[#allocation10 + $0x94] sm:$0xf]
    %v922 = vld [vmem:[#allocation10 + $0x98] sm:$0xf]
    %v923 = vld [vmem:[#allocation10 + $0x9c] sm:$0xf]
    %v924 = vld [vmem:[#allocation10 + $0xa0] sm:$0xf]
    %v925 = vld [vmem:[#allocation10 + $0xa4] sm:$0xf]
    %v926 = vld [vmem:[#allocation10 + $0xa8] sm:$0xf]
    %v927 = vld [vmem:[#allocation10 + $0xac] sm:$0xf]
    %v928 = vld [vmem:[#allocation10 + $0xb0] sm:$0xf]
    %v929 = vld [vmem:[#allocation10 + $0xb4] sm:$0xf]
    %v930 = vld [vmem:[#allocation10 + $0xb8] sm:$0xf]
    %v931 = vld [vmem:[#allocation10 + $0xbc] sm:$0xf]
    %v932 = vld [vmem:[#allocation10 + $0xc0] sm:$0xf]
    %v933 = vld [vmem:[#allocation10 + $0xc4] sm:$0xf]
    %v934 = vld [vmem:[#allocation10 + $0xc8] sm:$0xf]
    %v935 = vld [vmem:[#allocation10 + $0xcc] sm:$0xf]
    %v936 = vld [vmem:[#allocation10 + $0xd0] sm:$0xf]
    %v937 = vld [vmem:[#allocation10 + $0xd4] sm:$0xf]
    %v938 = vld [vmem:[#allocation10 + $0xd8] sm:$0xf]
    %v939 = vld [vmem:[#allocation10 + $0xdc] sm:$0xf]
    %v940 = vld [vmem:[#allocation10 + $0xe0] sm:$0xf]
    %v941 = vld [vmem:[#allocation10 + $0xe4] sm:$0xf]
    %v942 = vld [vmem:[#allocation10 + $0xe8] sm:$0xf]
    %v943 = vld [vmem:[#allocation10 + $0xec] sm:$0xf]
    %v944 = vld [vmem:[#allocation10 + $0xf0] sm:$0xf]
    %v945 = vld [vmem:[#allocation10 + $0xf4] sm:$0xf]
    %v946 = vld [vmem:[#allocation10 + $0xf8] sm:$0xf]
    %v947 = vld [vmem:[#allocation10 + $0xfc] sm:$0xf]
    %v948 = vld [vmem:[%s5] sm:$0x1]
    %v950 = vperm.slane %v948, 0
    %v1016 = vunpack.c.l.b16 %v884
    %v1017 = vunpack.c.l.b16 %v885
    %v1018 = vunpack.c.l.b16 %v886
    %v1019 = vunpack.c.l.b16 %v887
    %v1020 = vunpack.c.l.b16 %v888
    %v1021 = vunpack.c.l.b16 %v889
    %v1022 = vunpack.c.l.b16 %v890
    %v1023 = vunpack.c.l.b16 %v891
    %v1024 = vunpack.c.l.b16 %v892
    %v1025 = vunpack.c.l.b16 %v893
    %v1026 = vunpack.c.l.b16 %v894
    %v1027 = vunpack.c.l.b16 %v895
    %v1028 = vunpack.c.l.b16 %v896
    %v1029 = vunpack.c.l.b16 %v897
    %v1030 = vunpack.c.l.b16 %v898
    %v1031 = vunpack.c.l.b16 %v899
    %v1032 = vunpack.c.l.b16 %v900
    %v1033 = vunpack.c.l.b16 %v901
    %v1034 = vunpack.c.l.b16 %v902
    %v1035 = vunpack.c.l.b16 %v903
    %v1036 = vunpack.c.l.b16 %v904
    %v1037 = vunpack.c.l.b16 %v905
    %v1038 = vunpack.c.l.b16 %v906
    %v1039 = vunpack.c.l.b16 %v907
    %v1040 = vunpack.c.l.b16 %v908
    %v1041 = vunpack.c.l.b16 %v909
    %v1042 = vunpack.c.l.b16 %v910
    %v1043 = vunpack.c.l.b16 %v911
    %v1044 = vunpack.c.l.b16 %v912
    %v1045 = vunpack.c.l.b16 %v913
    %v1046 = vunpack.c.l.b16 %v914
    %v1047 = vunpack.c.l.b16 %v915
    %v1048 = vunpack.c.l.b16 %v916
    %v1049 = vunpack.c.l.b16 %v917
    %v1050 = vunpack.c.l.b16 %v918
    %v1051 = vunpack.c.l.b16 %v919
    %v1052 = vunpack.c.l.b16 %v920
    %v1053 = vunpack.c.l.b16 %v921
    %v1054 = vunpack.c.l.b16 %v922
    %v1055 = vunpack.c.l.b16 %v923
    %v1056 = vunpack.c.l.b16 %v924
    %v1057 = vunpack.c.l.b16 %v925
    %v1058 = vunpack.c.l.b16 %v926
    %v1059 = vunpack.c.l.b16 %v927
    %v1060 = vunpack.c.l.b16 %v928
    %v1061 = vunpack.c.l.b16 %v929
    %v1062 = vunpack.c.l.b16 %v930
    %v1063 = vunpack.c.l.b16 %v931
    %v1064 = vunpack.c.l.b16 %v932
    %v1065 = vunpack.c.l.b16 %v933
    %v1066 = vunpack.c.l.b16 %v934
    %v1067 = vunpack.c.l.b16 %v935
    %v1068 = vunpack.c.l.b16 %v936
    %v1069 = vunpack.c.l.b16 %v937
    %v1070 = vunpack.c.l.b16 %v938
    %v1071 = vunpack.c.l.b16 %v939
    %v1072 = vunpack.c.l.b16 %v940
    %v1073 = vunpack.c.l.b16 %v941
    %v1074 = vunpack.c.l.b16 %v942
    %v1075 = vunpack.c.l.b16 %v943
    %v1076 = vunpack.c.l.b16 %v944
    %v1077 = vunpack.c.l.b16 %v945
    %v1078 = vunpack.c.l.b16 %v946
    %v1079 = vunpack.c.l.b16 %v947
    %v1080 = vpack.c.b16 %v1017, %v1016
    %v1081 = vpack.c.b16 %v1019, %v1018
    %v1082 = vpack.c.b16 %v1021, %v1020
    %v1083 = vpack.c.b16 %v1023, %v1022
    %v1084 = vpack.c.b16 %v1025, %v1024
    %v1085 = vpack.c.b16 %v1027, %v1026
    %v1086 = vpack.c.b16 %v1029, %v1028
    %v1087 = vpack.c.b16 %v1031, %v1030
    %v1088 = vpack.c.b16 %v1033, %v1032
    %v1089 = vpack.c.b16 %v1035, %v1034
    %v1090 = vpack.c.b16 %v1037, %v1036
    %v1091 = vpack.c.b16 %v1039, %v1038
    %v1092 = vpack.c.b16 %v1041, %v1040
    %v1093 = vpack.c.b16 %v1043, %v1042
    %v1094 = vpack.c.b16 %v1045, %v1044
    %v1095 = vpack.c.b16 %v1047, %v1046
    %v1096 = vpack.c.b16 %v1049, %v1048
    %v1097 = vpack.c.b16 %v1051, %v1050
    %v1098 = vpack.c.b16 %v1053, %v1052
    %v1099 = vpack.c.b16 %v1055, %v1054
    %v1100 = vpack.c.b16 %v1057, %v1056
    %v1101 = vpack.c.b16 %v1059, %v1058
    %v1102 = vpack.c.b16 %v1061, %v1060
    %v1103 = vpack.c.b16 %v1063, %v1062
    %v1104 = vpack.c.b16 %v1065, %v1064
    %v1105 = vpack.c.b16 %v1067, %v1066
    %v1106 = vpack.c.b16 %v1069, %v1068
    %v1107 = vpack.c.b16 %v1071, %v1070
    %v1108 = vpack.c.b16 %v1073, %v1072
    %v1109 = vpack.c.b16 %v1075, %v1074
    %v1110 = vpack.c.b16 %v1077, %v1076
    %v1111 = vpack.c.b16 %v1079, %v1078
    %1144 = vmatpush.bf16.msra.mxu0 %v1087
    %1145 = vmatpush.bf16.msra.mxu0 %v1086
    %1146 = vmatpush.bf16.msra.mxu0 %v1085
    %1147 = vmatpush.bf16.msra.mxu0 %v1084
    %1148 = vmatpush.bf16.msra.mxu0 %v1083
    %1149 = vmatpush.bf16.msra.mxu0 %v1082
    %1150 = vmatpush.bf16.msra.mxu0 %v1081
    %1151 = vmatpush.bf16.msra.mxu0 %v1080
    %1152 = vmatmul.bf16.gmra.mxu0 %v864
    %v1153 = vpop.f32.mrf.mxu0
    %v1154 = vadd.f32 %v950, %v1153
    %v1155 = vpop.f32.mrf.mxu0
    %v1156 = vadd.f32 %v950, %v1155
    %1157 = vdwg.mxu0
    %1158 = vmatpush.bf16.msra.mxu0 %v1095
    %1159 = vmatpush.bf16.msra.mxu0 %v1094
    %1160 = vmatpush.bf16.msra.mxu0 %v1093
    %1161 = vmatpush.bf16.msra.mxu0 %v1092
    %1162 = vmatpush.bf16.msra.mxu0 %v1091
    %1163 = vmatpush.bf16.msra.mxu0 %v1090
    %1164 = vmatpush.bf16.msra.mxu0 %v1089
    %1165 = vmatpush.bf16.msra.mxu0 %v1088
    %1166 = vmatmul.bf16.gmra.mxu0 %v870
    %v1167 = vpop.f32.mrf.mxu0
    %v1168 = vadd.f32 %v1154, %v1167
    %v1169 = vpop.f32.mrf.mxu0
    %v1170 = vadd.f32 %v1156, %v1169
    %1171 = vdwg.mxu0
    %1172 = vmatpush.bf16.msra.mxu0 %v1103
    %1173 = vmatpush.bf16.msra.mxu0 %v1102
    %1174 = vmatpush.bf16.msra.mxu0 %v1101
    %1175 = vmatpush.bf16.msra.mxu0 %v1100
    %1176 = vmatpush.bf16.msra.mxu0 %v1099
    %1177 = vmatpush.bf16.msra.mxu0 %v1098
    %1178 = vmatpush.bf16.msra.mxu0 %v1097
    %1179 = vmatpush.bf16.msra.mxu0 %v1096
    %1180 = vmatmul.bf16.gmra.mxu0 %v876
    %v1181 = vpop.f32.mrf.mxu0
    %v1182 = vadd.f32 %v1168, %v1181
    %v1183 = vpop.f32.mrf.mxu0
    %v1184 = vadd.f32 %v1170, %v1183
    %1185 = vdwg.mxu0
    %1186 = vmatpush.bf16.msra.mxu0 %v1111
    %1187 = vmatpush.bf16.msra.mxu0 %v1110
    %1188 = vmatpush.bf16.msra.mxu0 %v1109
    %1189 = vmatpush.bf16.msra.mxu0 %v1108
    %1190 = vmatpush.bf16.msra.mxu0 %v1107
    %1191 = vmatpush.bf16.msra.mxu0 %v1106
    %1192 = vmatpush.bf16.msra.mxu0 %v1105
    %1193 = vmatpush.bf16.msra.mxu0 %v1104
    %1194 = vmatmul.bf16.gmra.mxu0 %v882
    %v1195 = vpop.f32.mrf.mxu0
    %v1196 = vadd.f32 %v1182, %v1195
    %v1197 = vpop.f32.mrf.mxu0
    %v1198 = vadd.f32 %v1184, %v1197
    %1199 = vdwg.mxu0
    %1200 = vst [vmem:[#allocation11] sm:$0xff] %v1196
    %1201 = vst [vmem:[#allocation11 + $0x8] sm:$0xff] %v1198
    // Predicated region
    $region46: #{tpu_custom_call.1} parent=1 // pred_check
      _
    $region47: #{tpu_custom_call.1} parent=1 // pred_check_branch
      %1203 = sbr.rel (0) target = $region49
    $region48: #{tpu_custom_call.1} parent=1 // pred_region
      %1205 = vsyncadd [#allocation4], 0
      %s1206 = sshll.u32 [#allocation11], 4
      %s1207 = int_to_ptr.vmem [resolvable:$true] %s1206
      %s1208 = sshll.u32 %s6, 4
      %s1209 = int_to_ptr.hbm [resolvable:$true] %s1208
      %1214 = dma.vmem_to_hbm [thread:$0]  %s1207, 256, %s1209, [#allocation4], 128, 128, 8
    $region49: #{tpu_custom_call.1} parent=1 // pred_fallthru
      _
    // Predicated region
    $region50: #{tpu_custom_call.1} parent=1 // pred_check
      _
    $region51: #{tpu_custom_call.1} parent=1 // pred_check_branch
      %1216 = sbr.rel (0) target = $region53
    $region52: #{tpu_custom_call.1} parent=1 // pred_region
      %1218 = dma.done [#allocation4], 256
    $region53: #{tpu_custom_call.1} parent=1 // pred_fallthru
      _
    %1219 = vsyncpa [#allocation3], 1
    %1220 = vsyncpa [#allocation6], 1
    %1221 = vsyncpa [#allocation9], 1
    %1222 = vsyncpa [#allocation4], 1

</llo_original>
